<compile_context>
chip_gen: v7x
topology: tpu7x:2x2x1
jax: 0.10.0
libtpu: 0.0.40
codegen_flags: <defaults>
</compile_context>

<pallas_src>
import jax
import jax.numpy as jnp
from jax.experimental import pallas as pl
from jax.experimental.pallas import tpu as pltpu


def _round_up(x, m):
    return ((x + m - 1) // m) * m


def _erf(x):
    # Abramowitz & Stegun 7.1.26, |error| <= 1.5e-7. exp + arithmetic only.
    a1, a2, a3, a4, a5 = (0.254829592, -0.284496736, 1.421413741,
                          -1.453152027, 1.061405429)
    p = 0.3275911
    s = jnp.where(x >= 0.0, 1.0, -1.0)
    ax = jnp.abs(x)
    t = 1.0 / (1.0 + p * ax)
    poly = ((((a5 * t + a4) * t + a3) * t + a2) * t + a1) * t
    return s * (1.0 - poly * jnp.exp(-ax * ax))


def _gelu_exact(x):
    # torch.nn.GELU() default (erf form); deviation from exact erf ~1e-7.
    return 0.5 * x * (1.0 + _erf(x * 0.7071067811865476))


# ----------------------------- kernels ---------------------------------------

def _head_kernel(x_ref, w1_ref, b1_ref, w2_ref, b2_ref, o_ref):
    """Weights fully resident: one batch tile per grid step."""
    h = jnp.dot(x_ref[...], w1_ref[...], preferred_element_type=jnp.float32)
    h = _gelu_exact(h + b1_ref[...].astype(jnp.float32))
    # Dropout is identity at inference.
    # TODO(synk): training-mode dropout (mask + 1/(1-p) scale) not implemented.
    y = jnp.dot(h.astype(w2_ref.dtype), w2_ref[...],
                preferred_element_type=jnp.float32)
    o_ref[...] = (y + b2_ref[...].astype(jnp.float32)).astype(o_ref.dtype)


def _head_kernel_htiled(x_ref, w1_ref, b1_ref, w2_ref, b2_ref, o_ref, acc_ref):
    """Hidden-dim tiled: grid = (batch tiles, hidden chunks); axis 1 reduces."""
    k = pl.program_id(1)

    @pl.when(k == 0)
    def _():
        acc_ref[...] = jnp.zeros_like(acc_ref)

    h = jnp.dot(x_ref[...], w1_ref[...], preferred_element_type=jnp.float32)
    h = _gelu_exact(h + b1_ref[...].astype(jnp.float32))
    acc_ref[...] += jnp.dot(h.astype(w2_ref.dtype), w2_ref[...],
                            preferred_element_type=jnp.float32)

    @pl.when(k == pl.num_programs(1) - 1)
    def _():
        o_ref[...] = (acc_ref[...] + b2_ref[...].astype(jnp.float32)
                      ).astype(o_ref.dtype)


# ----------------------------- wrapper ----------------------------------------

def classification_head(x, w1, b1, w2, b2, *, block_b=512, h_block=None,
                        compute_dtype=None):
    """y = Linear2(GELU(Linear1(x))); dropout = identity (eval mode).

    x: (B, D); w1: (D, H); b1: (H,) or (1, H); w2: (H, C); b2: (C,) or (1, C).
    Weight layout is (in, out) — transpose of nn.Linear.weight.
    compute_dtype: dtype fed to the MXU (default: bf16 when inputs are f32);
    accumulation / bias-add / GELU always run in f32; output keeps x.dtype.
    """
    orig_dtype = x.dtype
    B, D = x.shape
    H = w1.shape[1]
    C = w2.shape[1]
    b1 = b1.reshape(1, -1).astype(jnp.float32)
    b2 = b2.reshape(1, -1).astype(jnp.float32)

    # ---- MXU input dtype ----------------------------------------------------
    if compute_dtype is None:
        compute_dtype = jnp.bfloat16 if x.dtype == jnp.float32 else x.dtype
    x = x.astype(compute_dtype)
    w1 = w1.astype(compute_dtype)
    w2 = w2.astype(compute_dtype)
    c_item = jnp.dtype(compute_dtype).itemsize
    o_item = jnp.dtype(orig_dtype).itemsize

    # ---- lane-dense padding targets (numerically inert) ----------------------
    Hp = _round_up(H, 128)
    Cp = _round_up(C, 128)

    # ---- VMEM budget / physical cap ------------------------------------------
    try:
        phys_vmem = int(pltpu.get_tpu_info().vmem_capacity_bytes)
    except Exception:
        phys_vmem = 64 << 20            # conservative (v7x per-TensorCore)
    cap = int(phys_vmem * 0.8)          # leave Mosaic scratch/semaphore headroom

    def _need_resident(tb):
        return (2 * tb * D * c_item                  # double-buffered x tile
                + 2 * tb * Cp * o_item               # double-buffered out tile
                + 2 * (D * Hp + Hp * Cp) * c_item    # weights (worst-case 2 bufs)
                + 2 * (Hp + Cp) * 4                  # biases (f32)
                + tb * (Hp + Cp) * 4                 # f32 intermediates (h, y)
                + (2 << 20))                         # misc headroom

    def _need_htiled(tb, th):
        return (2 * tb * D * c_item
                + 2 * tb * Cp * o_item
                + 2 * (D * th + th * Cp) * c_item
                + 2 * (th + Cp) * 4
                + tb * (th + Cp) * 4
                + tb * Cp * 4                        # f32 accumulator scratch
                + (2 << 20))

    # ---- batch tiling --------------------------------------------------------
    sub = {1: 32, 2: 16}.get(c_item, 8)              # packed sublane multiple
    if B <= 128:
        TB = _round_up(B, sub)
    elif B <= block_b:
        # >=2 grid steps so the "parallel" axis shards both TCs on v7x.
        TB = _round_up(pl.cdiv(B, 2), sub)
    else:
        TB = block_b
        if B >= 2048 and _need_resident(1024) <= cap:
            TB = 1024
    Bp = _round_up(B, TB)

    # ---- hidden-dim tiling decision ------------------------------------------
    TH = h_block
    if TH is None and _need_resident(TB) > cap:
        TH = 128
        for cand in (1024, 512, 256, 128):
            if _need_htiled(TB, cand) <= cap:
                TH = cand
                break
    if TH is not None:
        TH = _round_up(min(TH, Hp), 128)
        Hp = _round_up(Hp, TH)

    # ---- zero padding (inert: gelu(0)=0, padded w2/b2 rows/cols are zero) ----
    if Hp != H:
        w1 = jnp.pad(w1, ((0, 0), (0, Hp - H)))
        b1 = jnp.pad(b1, ((0, 0), (0, Hp - H)))
        w2 = jnp.pad(w2, ((0, Hp - H), (0, 0)))
    if Cp != C:
        w2 = jnp.pad(w2, ((0, 0), (0, Cp - C)))
        b2 = jnp.pad(b2, ((0, 0), (0, Cp - C)))
    if Bp != B:
        x = jnp.pad(x, ((0, Bp - B), (0, 0)))

    flops = 2 * Bp * D * Hp + 2 * Bp * Hp * Cp
    bytes_accessed = (Bp * D * c_item + Bp * Cp * o_item
                      + (D * Hp + Hp * Cp) * c_item + (Hp + Cp) * 4)

    if TH is None:
        grid = (Bp // TB,)
        need = _need_resident(TB)
        kernel = _head_kernel
        in_specs = [
            pl.BlockSpec((TB, D), lambda i: (i, 0)),    # x tile walks batch
            pl.BlockSpec((D, Hp), lambda i: (0, 0)),    # w1 resident
            pl.BlockSpec((1, Hp), lambda i: (0, 0)),    # b1 resident
            pl.BlockSpec((Hp, Cp), lambda i: (0, 0)),   # w2 resident
            pl.BlockSpec((1, Cp), lambda i: (0, 0)),    # b2 resident
        ]
        out_specs = pl.BlockSpec((TB, Cp), lambda i: (i, 0))
        scratch_shapes = []
        dim_sem = ("parallel",)
    else:
        grid = (Bp // TB, Hp // TH)
        need = _need_htiled(TB, TH)
        kernel = _head_kernel_htiled
        in_specs = [
            pl.BlockSpec((TB, D), lambda i, k: (i, 0)),
            pl.BlockSpec((D, TH), lambda i, k: (0, k)),
            pl.BlockSpec((1, TH), lambda i, k: (0, k)),
            pl.BlockSpec((TH, Cp), lambda i, k: (k, 0)),
            pl.BlockSpec((1, Cp), lambda i, k: (0, 0)),
        ]
        out_specs = pl.BlockSpec((TB, Cp), lambda i, k: (i, 0))
        scratch_shapes = [pltpu.VMEM((TB, Cp), jnp.float32)]
        dim_sem = ("parallel", "arbitrary")

    vmem_bytes = int(min(max(need, 16 << 20), cap))

    out = pl.pallas_call(
        kernel,
        out_shape=jax.ShapeDtypeStruct((Bp, Cp), orig_dtype),
        grid_spec=pltpu.PrefetchScalarGridSpec(
            num_scalar_prefetch=0,
            grid=grid,
            in_specs=in_specs,
            out_specs=out_specs,
            scratch_shapes=scratch_shapes,
        ),
        compiler_params=pltpu.CompilerParams(
            dimension_semantics=dim_sem,
            vmem_limit_bytes=vmem_bytes,
        ),
        cost_estimate=pl.CostEstimate(
            flops=int(flops),
            transcendentals=int(Bp * Hp),   # one exp per hidden element (erf)
            bytes_accessed=int(bytes_accessed),
        ),
    )(x, w1, b1, w2, b2)

    return out[:B, :C]


def init_params(key, embed_dim, num_classes, dtype=jnp.float32):
    hidden = embed_dim // 2
    k1, k2, k3, k4 = jax.random.split(key, 4)
    lim1 = 1.0 / (embed_dim ** 0.5)
    lim2 = 1.0 / (hidden ** 0.5)
    w1 = jax.random.uniform(k1, (embed_dim, hidden), dtype, -lim1, lim1)
    b1 = jax.random.uniform(k2, (1, hidden), dtype, -lim1, lim1)
    w2 = jax.random.uniform(k3, (hidden, num_classes), dtype, -lim2, lim2)
    b2 = jax.random.uniform(k4, (1, num_classes), dtype, -lim2, lim2)
    return w1, b1, w2, b2


def _reference(x, w1, b1, w2, b2):
    hp = jnp.dot(x, w1, precision=jax.lax.Precision.HIGHEST) + b1.reshape(1, -1)
    h = jax.nn.gelu(hp, approximate=False)
    return jnp.dot(h, w2, precision=jax.lax.Precision.HIGHEST) + b2.reshape(1, -1)


if __name__ == "__main__":
    key = jax.random.PRNGKey(0)
    kx, kp = jax.random.split(key)

    # Small shapes consistent with the module: (batch, embed_dim) -> num_classes.
    batch, embed_dim, num_classes = 4, 32, 8
    x = jax.random.normal(kx, (batch, embed_dim), jnp.float32)
    w1, b1, w2, b2 = init_params(kp, embed_dim, num_classes)
    ref = _reference(x, w1, b1, w2, b2)

    # 1) f32 compute path (weights resident).
    out_f32 = classification_head(x, w1, b1, w2, b2, compute_dtype=jnp.float32)
    jax.block_until_ready(out_f32)
    assert out_f32.shape == (batch, num_classes)
    assert jnp.allclose(out_f32, ref, atol=5e-3, rtol=1e-2), "f32 path mismatch"

    # 2) Default path (bf16-fed MXU, f32 accumulate).
    out_bf16 = classification_head(x, w1, b1, w2, b2)
    jax.block_until_ready(out_bf16)
    assert out_bf16.shape == (batch, num_classes)
    assert jnp.allclose(out_bf16, ref, atol=5e-2, rtol=5e-2), "bf16 path mismatch"

    # 3) H-tiled fallback path (forced), slightly larger head so Hp // TH == 2.
    batch2, embed2, classes2 = 8, 512, 10
    kx2, kp2 = jax.random.split(jax.random.PRNGKey(1))
    x2 = jax.random.normal(kx2, (batch2, embed2), jnp.float32)
    w1b, b1b, w2b, b2b = init_params(kp2, embed2, classes2)
    ref2 = _reference(x2, w1b, b1b, w2b, b2b)
    out2 = classification_head(x2, w1b, b1b, w2b, b2b,
                               compute_dtype=jnp.float32, h_block=128)
    jax.block_until_ready(out2)
    assert out2.shape == (batch2, classes2)
    assert jnp.allclose(out2, ref2, atol=5e-3, rtol=1e-2), "H-tiled path mismatch"

    print("KERNEL_OK")
</pallas_src>

<mosaic_0001>
module attributes {stable_mosaic.version = 11 : i64} {
  func.func @_head_kernel(%arg0: i32, %arg1: memref<8x32xf32, #tpu.memory_space<vmem>>, %arg2: memref<32x128xf32, #tpu.memory_space<vmem>>, %arg3: memref<1x128xf32, #tpu.memory_space<vmem>>, %arg4: memref<128x128xf32, #tpu.memory_space<vmem>>, %arg5: memref<1x128xf32, #tpu.memory_space<vmem>>, %arg6: memref<8x128xf32, #tpu.memory_space<vmem>>) attributes {dimension_semantics = [#tpu.dimension_semantics<parallel>], iteration_bounds = array<i64: 1>, scalar_prefetch = 0 : i64, scratch_operands = 0 : i64, tpu.core_type = #tpu.core_type<tc>, window_params = [{transform_indices = @transform_0, window_bounds = array<i64: 8, 32>}, {pipeline_mode = #tpu.pipeline_mode<synchronous>, transform_indices = @transform_1, window_bounds = array<i64: 32, 128>}, {pipeline_mode = #tpu.pipeline_mode<synchronous>, transform_indices = @transform_2, window_bounds = array<i64: 1, 128>}, {pipeline_mode = #tpu.pipeline_mode<synchronous>, transform_indices = @transform_3, window_bounds = array<i64: 128, 128>}, {pipeline_mode = #tpu.pipeline_mode<synchronous>, transform_indices = @transform_4, window_bounds = array<i64: 1, 128>}, {transform_indices = @transform_5, window_bounds = array<i64: 8, 128>}]} {
    %c0 = arith.constant 0 : index
    %c0_0 = arith.constant 0 : index
    %0 = vector.load %arg1[%c0, %c0_0] : memref<8x32xf32, #tpu.memory_space<vmem>>, vector<8x32xf32>
    %c0_1 = arith.constant 0 : index
    %c0_2 = arith.constant 0 : index
    %1 = vector.load %arg2[%c0_1, %c0_2] : memref<32x128xf32, #tpu.memory_space<vmem>>, vector<32x128xf32>
    %cst = arith.constant dense<0.000000e+00> : vector<8x128xf32>
    %2 = tpu.matmul %0, %1, %cst {dimension_numbers = #tpu.dot_dimension_numbers<[1], [0], [0], [1], [0, 0, 1, 1], [], []>} : vector<8x32xf32>, vector<32x128xf32>, vector<8x128xf32> -> vector<8x128xf32>
    %c0_3 = arith.constant 0 : index
    %c0_4 = arith.constant 0 : index
    %3 = vector.load %arg3[%c0_3, %c0_4] : memref<1x128xf32, #tpu.memory_space<vmem>>, vector<1x128xf32>
    %4 = vector.broadcast %3 : vector<1x128xf32> to vector<8x128xf32>
    %5 = arith.addf %2, %4 : vector<8x128xf32>
    %cst_5 = arith.constant 5.000000e-01 : f32
    %6 = vector.broadcast %cst_5 : f32 to vector<8x128xf32>
    %7 = arith.mulf %6, %5 : vector<8x128xf32>
    %cst_6 = arith.constant 0.707106769 : f32
    %8 = vector.broadcast %cst_6 : f32 to vector<8x128xf32>
    %9 = arith.mulf %5, %8 : vector<8x128xf32>
    %cst_7 = arith.constant 0.000000e+00 : f32
    %10 = vector.broadcast %cst_7 : f32 to vector<8x128xf32>
    %11 = arith.cmpf oge, %9, %10 : vector<8x128xf32>
    %cst_8 = arith.constant 1.000000e+00 : f32
    %cst_9 = arith.constant -1.000000e+00 : f32
    %12 = vector.broadcast %cst_8 : f32 to vector<8x128xf32>
    %13 = vector.broadcast %cst_9 : f32 to vector<8x128xf32>
    %14 = arith.select %11, %12, %13 : vector<8x128xi1>, vector<8x128xf32>
    %15 = math.absf %9 : vector<8x128xf32>
    %cst_10 = arith.constant 0.327591091 : f32
    %16 = vector.broadcast %cst_10 : f32 to vector<8x128xf32>
    %17 = arith.mulf %16, %15 : vector<8x128xf32>
    %cst_11 = arith.constant 1.000000e+00 : f32
    %18 = vector.broadcast %cst_11 : f32 to vector<8x128xf32>
    %19 = arith.addf %18, %17 : vector<8x128xf32>
    %cst_12 = arith.constant 1.000000e+00 : f32
    %20 = vector.broadcast %cst_12 : f32 to vector<8x128xf32>
    %21 = arith.divf %20, %19 : vector<8x128xf32>
    %cst_13 = arith.constant 1.06140542 : f32
    %22 = vector.broadcast %cst_13 : f32 to vector<8x128xf32>
    %23 = arith.mulf %22, %21 : vector<8x128xf32>
    %cst_14 = arith.constant -1.45315206 : f32
    %24 = vector.broadcast %cst_14 : f32 to vector<8x128xf32>
    %25 = arith.addf %23, %24 : vector<8x128xf32>
    %26 = arith.mulf %25, %21 : vector<8x128xf32>
    %cst_15 = arith.constant 1.42141378 : f32
    %27 = vector.broadcast %cst_15 : f32 to vector<8x128xf32>
    %28 = arith.addf %26, %27 : vector<8x128xf32>
    %29 = arith.mulf %28, %21 : vector<8x128xf32>
    %cst_16 = arith.constant -0.284496725 : f32
    %30 = vector.broadcast %cst_16 : f32 to vector<8x128xf32>
    %31 = arith.addf %29, %30 : vector<8x128xf32>
    %32 = arith.mulf %31, %21 : vector<8x128xf32>
    %cst_17 = arith.constant 0.254829586 : f32
    %33 = vector.broadcast %cst_17 : f32 to vector<8x128xf32>
    %34 = arith.addf %32, %33 : vector<8x128xf32>
    %35 = arith.mulf %34, %21 : vector<8x128xf32>
    %cst_18 = arith.constant 0.000000e+00 : f32
    %36 = vector.broadcast %cst_18 : f32 to vector<8x128xf32>
    %37 = arith.subf %36, %15 : vector<8x128xf32>
    %38 = arith.mulf %37, %15 : vector<8x128xf32>
    %39 = math.exp %38 : vector<8x128xf32>
    %40 = arith.mulf %35, %39 : vector<8x128xf32>
    %cst_19 = arith.constant 1.000000e+00 : f32
    %41 = vector.broadcast %cst_19 : f32 to vector<8x128xf32>
    %42 = arith.subf %41, %40 : vector<8x128xf32>
    %43 = arith.mulf %14, %42 : vector<8x128xf32>
    %cst_20 = arith.constant 1.000000e+00 : f32
    %44 = vector.broadcast %cst_20 : f32 to vector<8x128xf32>
    %45 = arith.addf %44, %43 : vector<8x128xf32>
    %46 = arith.mulf %7, %45 : vector<8x128xf32>
    %c0_21 = arith.constant 0 : index
    %c0_22 = arith.constant 0 : index
    %47 = vector.load %arg4[%c0_21, %c0_22] : memref<128x128xf32, #tpu.memory_space<vmem>>, vector<128x128xf32>
    %cst_23 = arith.constant dense<0.000000e+00> : vector<8x128xf32>
    %48 = tpu.matmul %46, %47, %cst_23 {dimension_numbers = #tpu.dot_dimension_numbers<[1], [0], [0], [1], [0, 0, 1, 1], [], []>} : vector<8x128xf32>, vector<128x128xf32>, vector<8x128xf32> -> vector<8x128xf32>
    %c0_24 = arith.constant 0 : index
    %c0_25 = arith.constant 0 : index
    %49 = vector.load %arg5[%c0_24, %c0_25] : memref<1x128xf32, #tpu.memory_space<vmem>>, vector<1x128xf32>
    %50 = vector.broadcast %49 : vector<1x128xf32> to vector<8x128xf32>
    %51 = arith.addf %48, %50 : vector<8x128xf32>
    %c0_26 = arith.constant 0 : index
    %c0_27 = arith.constant 0 : index
    %52 = vector.load %arg6[%c0_26, %c0_27] : memref<8x128xf32, #tpu.memory_space<vmem>>, vector<8x128xf32>
    tpu.vector_store %arg6[%c0_26, %c0_27], %51 {strides = array<i32>} : memref<8x128xf32, #tpu.memory_space<vmem>>, vector<8x128xf32>,
    return
  }
  func.func @transform_0(%arg0: i32) -> (i32, i32) {
    %c0_i32 = arith.constant 0 : i32
    %c0_i32_0 = arith.constant 0 : i32
    return %arg0, %c0_i32 : i32, i32
  }
  func.func @transform_1(%arg0: i32) -> (i32, i32) {
    %c0_i32 = arith.constant 0 : i32
    %c0_i32_0 = arith.constant 0 : i32
    %c0_i32_1 = arith.constant 0 : i32
    return %c0_i32, %c0_i32_0 : i32, i32
  }
  func.func @transform_2(%arg0: i32) -> (i32, i32) {
    %c0_i32 = arith.constant 0 : i32
    %c0_i32_0 = arith.constant 0 : i32
    %c0_i32_1 = arith.constant 0 : i32
    return %c0_i32, %c0_i32_0 : i32, i32
  }
  func.func @transform_3(%arg0: i32) -> (i32, i32) {
    %c0_i32 = arith.constant 0 : i32
    %c0_i32_0 = arith.constant 0 : i32
    %c0_i32_1 = arith.constant 0 : i32
    return %c0_i32, %c0_i32_0 : i32, i32
  }
  func.func @transform_4(%arg0: i32) -> (i32, i32) {
    %c0_i32 = arith.constant 0 : i32
    %c0_i32_0 = arith.constant 0 : i32
    %c0_i32_1 = arith.constant 0 : i32
    return %c0_i32, %c0_i32_0 : i32, i32
  }
  func.func @transform_5(%arg0: i32) -> (i32, i32) {
    %c0_i32 = arith.constant 0 : i32
    %c0_i32_0 = arith.constant 0 : i32
    return %arg0, %c0_i32 : i32, i32
  }
}

</mosaic_0001>

<llo_original>
// kernel: tpu_custom_call.1
$region0: #{tpu_custom_call.1}
  #allocation0 [shape = 'u32[]', space=smem, size = 0x4, offset = 0x4, fixed_abs, tag = 'smem constant byte address 0x4 - core index']
  #allocation1 [shape = 'u32[144,128]{1,0:T(1,128)}', space=vmem, size = 0x12000, scoped, tag = 'internal scratch']
  %s0 = inlined_call_operand.hbm [shape: f32[8,32], index: 0, kind: input, shape index: {}]
  %s1 = inlined_call_operand.hbm [shape: f32[32,128], index: 1, kind: input, shape index: {}]
  %s2 = inlined_call_operand.vmem [shape: f32[1,128], index: 2, kind: input, shape index: {}]
  %s3 = inlined_call_operand.hbm [shape: f32[128,128], index: 3, kind: input, shape index: {}]
  %s4 = inlined_call_operand.vmem [shape: f32[1,128], index: 4, kind: input, shape index: {}]
  %s5 = inlined_call_operand.hbm [shape: f32[8,128], index: 5, kind: output, shape index: {}]
  %s6 = sld [smem:[#allocation0]]
  $region42: #{tpu_custom_call.1} parent=0
    _
  %s8 = ssub.s32 1, %s6
  %s9 = scalar_select 0, %s8, %s6
  $region1: #{tpu_custom_call.1} parent=0
    #allocation2 [shape = 'u8[4096]{0}', space=vmem, size = 0x1000, scoped, tag = 'input window, operand 0, single buffered']
    #allocation3 [shape = 's32[1]{0}', space=sflag, size = 0x4, scoped, tag = 'scoped memory for tpu_custom_call.1']
    #allocation4 [shape = 's32[1]{0}', space=sflag, size = 0x4, scoped, tag = 'scoped memory for tpu_custom_call.1']
    #allocation5 [shape = 'u8[16384]{0}', space=vmem, size = 0x4000, scoped, tag = 'input window, operand 1, single buffered']
    #allocation6 [shape = 's32[1]{0}', space=sflag, size = 0x4, scoped, tag = 'scoped memory for tpu_custom_call.1']
    #allocation7 [shape = 'u8[65536]{0}', space=vmem, size = 0x10000, scoped, tag = 'input window, operand 3, single buffered']
    #allocation8 [shape = 'u8[4096]{0}', space=vmem, size = 0x1000, scoped, tag = 'output window, operand 0, single buffered']
    %10 = vsyncpa [#allocation3], 0
    %11 = vsyncpa [#allocation6], 0
    %12 = vsyncpa [#allocation4], 0
    // Predicated region
    $region2: #{tpu_custom_call.1} parent=1 // pred_check
      _
    $region3: #{tpu_custom_call.1} parent=1 // pred_check_branch
      %14 = sbr.rel (0) target = $region5
    $region4: #{tpu_custom_call.1} parent=1 // pred_region
      %s16 = ssub.s32 128, 128
      %17 = vsyncadd [#allocation3], %s16
      %s19 = sshll.u32 [#allocation2], 4
      %s20 = int_to_ptr.vmem [resolvable:$true] %s19
      %22 = dma.hbm_to_vmem [thread:$0]  %s0, 128, %s20, [#allocation3]
    $region5: #{tpu_custom_call.1} parent=1 // pred_fallthru
      _
    // Predicated region
    $region6: #{tpu_custom_call.1} parent=1 // pred_check
      _
    $region7: #{tpu_custom_call.1} parent=1 // pred_check_branch
      %24 = sbr.rel (0) target = $region9
    $region8: #{tpu_custom_call.1} parent=1 // pred_region
      %s26 = ssub.s32 512, 512
      %27 = vsyncadd [#allocation6], %s26
      %s28 = sshll.u32 [#allocation5], 4
      %s29 = int_to_ptr.vmem [resolvable:$true] %s28
      %34 = dma.hbm_to_vmem [thread:$0]  %s1, 512, %s29, [#allocation6], 128, 128, 8
    $region9: #{tpu_custom_call.1} parent=1 // pred_fallthru
      _
    // Predicated region
    $region10: #{tpu_custom_call.1} parent=1 // pred_check
      _
    $region11: #{tpu_custom_call.1} parent=1 // pred_check_branch
      %36 = sbr.rel (0) target = $region13
    $region12: #{tpu_custom_call.1} parent=1 // pred_region
      _
    $region13: #{tpu_custom_call.1} parent=1 // pred_fallthru
      _
    // Predicated region
    $region14: #{tpu_custom_call.1} parent=1 // pred_check
      _
    $region15: #{tpu_custom_call.1} parent=1 // pred_check_branch
      %38 = sbr.rel (0) target = $region17
    $region16: #{tpu_custom_call.1} parent=1 // pred_region
      %s40 = ssub.s32 2048, 2048
      %41 = vsyncadd [#allocation6], %s40
      %s42 = sshll.u32 [#allocation7], 4
      %s43 = int_to_ptr.vmem [resolvable:$true] %s42
      %48 = dma.hbm_to_vmem [thread:$0]  %s3, 2048, %s43, [#allocation6], 128, 128, 8
    $region17: #{tpu_custom_call.1} parent=1 // pred_fallthru
      _
    // Predicated region
    $region18: #{tpu_custom_call.1} parent=1 // pred_check
      _
    $region19: #{tpu_custom_call.1} parent=1 // pred_check_branch
      %50 = sbr.rel (0) target = $region21
    $region20: #{tpu_custom_call.1} parent=1 // pred_region
      _
    $region21: #{tpu_custom_call.1} parent=1 // pred_fallthru
      _
    // Predicated region
    $region22: #{tpu_custom_call.1} parent=1 // pred_check
      _
    $region23: #{tpu_custom_call.1} parent=1 // pred_check_branch
      %52 = sbr.rel (0) target = $region25
    $region24: #{tpu_custom_call.1} parent=1 // pred_region
      %53 = dma.done [#allocation3], 128
    $region25: #{tpu_custom_call.1} parent=1 // pred_fallthru
      _
    // Predicated region
    $region26: #{tpu_custom_call.1} parent=1 // pred_check
      _
    $region27: #{tpu_custom_call.1} parent=1 // pred_check_branch
      %55 = sbr.rel (0) target = $region29
    $region28: #{tpu_custom_call.1} parent=1 // pred_region
      %56 = dma.done [#allocation6], 512
    $region29: #{tpu_custom_call.1} parent=1 // pred_fallthru
      _
    // Predicated region
    $region30: #{tpu_custom_call.1} parent=1 // pred_check
      _
    $region31: #{tpu_custom_call.1} parent=1 // pred_check_branch
      %58 = sbr.rel (0) target = $region33
    $region32: #{tpu_custom_call.1} parent=1 // pred_region
      %59 = dma.done [#allocation6], 2048
    $region33: #{tpu_custom_call.1} parent=1 // pred_fallthru
      _
    %v60 = vld [vmem:[#allocation2] sm:$0xff]
    %v61 = vld [vmem:[#allocation5] sm:$0xff]
    %v62 = vld [vmem:[#allocation5 + $0x8] sm:$0xff]
    %v63 = vld [vmem:[#allocation5 + $0x10] sm:$0xff]
    %v64 = vld [vmem:[#allocation5 + $0x18] sm:$0xff]
    %v65 = vld [vmem:[%s2] sm:$0x1]
    %v67 = vlaneseq
    %v68 = vshrl.u32 %v67, 7
    %v69 = vsub.s32 0, %v68
    %v70 = vrot.slane %v65, %v69
    %vm72 = vcmask 261120
    %v74 = vsel %vm72, %v60, 0
    %76 = vmatprep.subr.mxu0 0.0
    %77 = vmatpush1.msra.mxu0 %v61
    %78 = vmatprep.subr.mxu0 0.0
    %79 = vmatpush1.msra.mxu0 %v62
    %80 = vmatprep.subr.mxu0 0.0
    %81 = vmatpush1.msra.mxu0 %v63
    %82 = vmatprep.subr.mxu0 0.0
    %83 = vmatpush1.msra.mxu0 %v64
    %84 = vmatprep.subr.mxu0 0.0
    %85 = vmatpush1.msra.mxu0 0.0
    %86 = vmatprep.subr.mxu0 0.0
    %87 = vmatpush1.msra.mxu0 0.0
    %88 = vmatprep.subr.mxu0 0.0
    %89 = vmatpush1.msra.mxu0 0.0
    %90 = vmatprep.subr.mxu0 0.0
    %91 = vmatpush1.msra.mxu0 0.0
    %92 = vmatprep.subr.mxu0 0.0
    %93 = vmatpush1.msra.mxu0 0.0
    %94 = vmatprep.subr.mxu0 0.0
    %95 = vmatpush1.msra.mxu0 0.0
    %96 = vmatprep.subr.mxu0 0.0
    %97 = vmatpush1.msra.mxu0 0.0
    %98 = vmatprep.subr.mxu0 0.0
    %99 = vmatpush1.msra.mxu0 0.0
    %100 = vmatprep.subr.mxu0 0.0
    %101 = vmatpush1.msra.mxu0 0.0
    %102 = vmatprep.subr.mxu0 0.0
    %103 = vmatpush1.msra.mxu0 0.0
    %104 = vmatprep.subr.mxu0 0.0
    %105 = vmatpush1.msra.mxu0 0.0
    %106 = vmatprep.subr.mxu0 0.0
    %107 = vmatpush1.msra.mxu0 0.0
    %108 = vmatprep.subr.mxu0 0.0
    %109 = vmatpush1.msra.mxu0 0.0
    %110 = vmatprep.subr.mxu0 0.0
    %111 = vmatpush1.msra.mxu0 0.0
    %112 = vmatprep.subr.mxu0 0.0
    %113 = vmatpush1.msra.mxu0 0.0
    %114 = vmatprep.subr.mxu0 0.0
    %115 = vmatpush1.msra.mxu0 0.0
    %116 = vmatprep.subr.mxu0 0.0
    %117 = vmatpush1.msra.mxu0 0.0
    %118 = vmatprep.subr.mxu0 0.0
    %119 = vmatpush1.msra.mxu0 0.0
    %120 = vmatprep.subr.mxu0 0.0
    %121 = vmatpush1.msra.mxu0 0.0
    %122 = vmatprep.subr.mxu0 0.0
    %123 = vmatpush1.msra.mxu0 0.0
    %124 = vmatprep.subr.mxu0 0.0
    %125 = vmatpush1.msra.mxu0 0.0
    %126 = vmatprep.subr.mxu0 0.0
    %127 = vmatpush1.msra.mxu0 0.0
    %128 = vmatprep.subr.mxu0 0.0
    %129 = vmatpush1.msra.mxu0 0.0
    %130 = vmatprep.subr.mxu0 0.0
    %131 = vmatpush1.msra.mxu0 0.0
    %132 = vmatprep.subr.mxu0 0.0
    %133 = vmatpush1.msra.mxu0 0.0
    %134 = vmatprep.subr.mxu0 0.0
    %135 = vmatpush1.msra.mxu0 0.0
    %136 = vmatprep.subr.mxu0 0.0
    %137 = vmatpush1.msra.mxu0 0.0
    %138 = vmatprep.subr.mxu0 0.0
    %139 = vmatpush1.msra.mxu0 0.0
    %140 = vmatprep.mubr.f32.mxu0 0.0
    %141 = vmatmul.mubr.f32.gmra.mrb[0].mxu0 %v74
    %v142 = vpop.f32.mrb[0].mxu0
    %v143 = vadd.f32 %v70, %v142
    %v144 = vpop.f32.mrb[0].mxu0
    %145 = vdwg.mxu0
    %v146 = vmul.f32 %v143, 0.5
    %v147 = vmul.f32 %v143, 0.70710677
    %vm148 = vcmp.ge.f32.partialorder %v147, 0.0
    %v149 = vsel %vm148, 1.0, -1.0
    %v150 = vand.u32 2147483647, %v147
    %v151 = vmul.f32 %v150, 0.3275911
    %v152 = vadd.f32 %v151, 1.0
    %v153 = vrcp.pop %v152
    %v154 = vmul.f32 1.0, %v153
    %v155 = vmul.f32 %v154, 1.0614054
    %v156 = vadd.f32 %v155, -1.4531521
    %v157 = vmul.f32 %v156, %v154
    %v158 = vadd.f32 %v157, 1.4214138
    %v159 = vmul.f32 %v158, %v154
    %v160 = vadd.f32 %v159, -0.28449672
    %v161 = vmul.f32 %v160, %v154
    %v162 = vadd.f32 %v161, 0.2548296
    %v163 = vmul.f32 %v162, %v154
    %v164 = vsub.f32 0.0, %v150
    %v165 = vmul.f32 %v164, %v150
    %v166 = vmul.f32 %v165, 1.442695
    %v167 = vpow.pop %v166
    %v168 = vmul.f32 %v163, %v167
    %v169 = vsub.f32 1.0, %v168
    %v170 = vmul.f32 %v149, %v169
    %v171 = vadd.f32 %v170, 1.0
    %v172 = vmul.f32 %v146, %v171
    %v173 = vld [vmem:[#allocation7] sm:$0xff]
    %v174 = vld [vmem:[#allocation7 + $0x8] sm:$0xff]
    %v175 = vld [vmem:[#allocation7 + $0x10] sm:$0xff]
    %v176 = vld [vmem:[#allocation7 + $0x18] sm:$0xff]
    %v177 = vld [vmem:[#allocation7 + $0x20] sm:$0xff]
    %v178 = vld [vmem:[#allocation7 + $0x28] sm:$0xff]
    %v179 = vld [vmem:[#allocation7 + $0x30] sm:$0xff]
    %v180 = vld [vmem:[#allocation7 + $0x38] sm:$0xff]
    %v181 = vld [vmem:[#allocation7 + $0x40] sm:$0xff]
    %v182 = vld [vmem:[#allocation7 + $0x48] sm:$0xff]
    %v183 = vld [vmem:[#allocation7 + $0x50] sm:$0xff]
    %v184 = vld [vmem:[#allocation7 + $0x58] sm:$0xff]
    %v185 = vld [vmem:[#allocation7 + $0x60] sm:$0xff]
    %v186 = vld [vmem:[#allocation7 + $0x68] sm:$0xff]
    %v187 = vld [vmem:[#allocation7 + $0x70] sm:$0xff]
    %v188 = vld [vmem:[#allocation7 + $0x78] sm:$0xff]
    %v189 = vld [vmem:[%s4] sm:$0x1]
    %v191 = vlaneseq
    %v192 = vshrl.u32 %v191, 7
    %v193 = vsub.s32 0, %v192
    %v194 = vrot.slane %v189, %v193
    %196 = vmatprep.subr.mxu0 0.0
    %197 = vmatpush1.msra.mxu0 %v173
    %198 = vmatprep.subr.mxu0 0.0
    %199 = vmatpush1.msra.mxu0 %v174
    %200 = vmatprep.subr.mxu0 0.0
    %201 = vmatpush1.msra.mxu0 %v175
    %202 = vmatprep.subr.mxu0 0.0
    %203 = vmatpush1.msra.mxu0 %v176
    %204 = vmatprep.subr.mxu0 0.0
    %205 = vmatpush1.msra.mxu0 %v177
    %206 = vmatprep.subr.mxu0 0.0
    %207 = vmatpush1.msra.mxu0 %v178
    %208 = vmatprep.subr.mxu0 0.0
    %209 = vmatpush1.msra.mxu0 %v179
    %210 = vmatprep.subr.mxu0 0.0
    %211 = vmatpush1.msra.mxu0 %v180
    %212 = vmatprep.subr.mxu0 0.0
    %213 = vmatpush1.msra.mxu0 %v181
    %214 = vmatprep.subr.mxu0 0.0
    %215 = vmatpush1.msra.mxu0 %v182
    %216 = vmatprep.subr.mxu0 0.0
    %217 = vmatpush1.msra.mxu0 %v183
    %218 = vmatprep.subr.mxu0 0.0
    %219 = vmatpush1.msra.mxu0 %v184
    %220 = vmatprep.subr.mxu0 0.0
    %221 = vmatpush1.msra.mxu0 %v185
    %222 = vmatprep.subr.mxu0 0.0
    %223 = vmatpush1.msra.mxu0 %v186
    %224 = vmatprep.subr.mxu0 0.0
    %225 = vmatpush1.msra.mxu0 %v187
    %226 = vmatprep.subr.mxu0 0.0
    %227 = vmatpush1.msra.mxu0 %v188
    %228 = vmatprep.subr.mxu0 0.0
    %229 = vmatpush1.msra.mxu0 0.0
    %230 = vmatprep.subr.mxu0 0.0
    %231 = vmatpush1.msra.mxu0 0.0
    %232 = vmatprep.subr.mxu0 0.0
    %233 = vmatpush1.msra.mxu0 0.0
    %234 = vmatprep.subr.mxu0 0.0
    %235 = vmatpush1.msra.mxu0 0.0
    %236 = vmatprep.subr.mxu0 0.0
    %237 = vmatpush1.msra.mxu0 0.0
    %238 = vmatprep.subr.mxu0 0.0
    %239 = vmatpush1.msra.mxu0 0.0
    %240 = vmatprep.subr.mxu0 0.0
    %241 = vmatpush1.msra.mxu0 0.0
    %242 = vmatprep.subr.mxu0 0.0
    %243 = vmatpush1.msra.mxu0 0.0
    %244 = vmatprep.subr.mxu0 0.0
    %245 = vmatpush1.msra.mxu0 0.0
    %246 = vmatprep.subr.mxu0 0.0
    %247 = vmatpush1.msra.mxu0 0.0
    %248 = vmatprep.subr.mxu0 0.0
    %249 = vmatpush1.msra.mxu0 0.0
    %250 = vmatprep.subr.mxu0 0.0
    %251 = vmatpush1.msra.mxu0 0.0
    %252 = vmatprep.subr.mxu0 0.0
    %253 = vmatpush1.msra.mxu0 0.0
    %254 = vmatprep.subr.mxu0 0.0
    %255 = vmatpush1.msra.mxu0 0.0
    %256 = vmatprep.subr.mxu0 0.0
    %257 = vmatpush1.msra.mxu0 0.0
    %258 = vmatprep.subr.mxu0 0.0
    %259 = vmatpush1.msra.mxu0 0.0
    %260 = vmatprep.mubr.f32.mxu0 0.0
    %261 = vmatmul.mubr.f32.gmra.mrb[0].mxu0 %v172
    %v262 = vpop.f32.mrb[0].mxu0
    %v263 = vadd.f32 %v194, %v262
    %v264 = vpop.f32.mrb[0].mxu0
    %265 = vdwg.mxu0
    %266 = vst [vmem:[#allocation8] sm:$0xff] %v263
    // Predicated region
    $region34: #{tpu_custom_call.1} parent=1 // pred_check
      _
    $region35: #{tpu_custom_call.1} parent=1 // pred_check_branch
      %268 = sbr.rel (0) target = $region37
    $region36: #{tpu_custom_call.1} parent=1 // pred_region
      %s270 = ssub.s32 128, 128
      %271 = vsyncadd [#allocation4], %s270
      %s273 = sshll.u32 [#allocation8], 4
      %s274 = int_to_ptr.vmem [resolvable:$true] %s273
      %276 = dma.vmem_to_hbm [thread:$0]  %s274, 128, %s5, [#allocation4]
    $region37: #{tpu_custom_call.1} parent=1 // pred_fallthru
      _
    // Predicated region
    $region38: #{tpu_custom_call.1} parent=1 // pred_check
      _
    $region39: #{tpu_custom_call.1} parent=1 // pred_check_branch
      %278 = sbr.rel (0) target = $region41
    $region40: #{tpu_custom_call.1} parent=1 // pred_region
      %279 = dma.done [#allocation4], 128
    $region41: #{tpu_custom_call.1} parent=1 // pred_fallthru
      _
    %280 = vsyncpa [#allocation3], 1
    %281 = vsyncpa [#allocation6], 1
    %282 = vsyncpa [#allocation4], 1

</llo_original>
